<compile_context>
chip_gen: v5e
topology: v5e:2x2
jax: 0.10.0
libtpu: 0.0.40
codegen_flags: <defaults>
</compile_context>

<pallas_src>
import functools

import jax
import jax.numpy as jnp
from jax.experimental import pallas as pl
from jax.experimental.pallas import tpu as pltpu

BN_EPS = 1e-5
_LANE = 128
_MAX_CHUNKS = 64          # max statically-unrolled 128-lane chunks per tile


def _round_up(v, m):
    return (v + m - 1) // m * m


def speaker_decoder_kernel(x_ref, w1m_ref, w1s_ref, b1_ref, wf_ref, bf_ref,
                           out_ref, emb_ref, sum_sc, sumsq_sc,
                           *, t_total, t_tile, n_t):
    """Grid = (n_t,) over time (the reduction axis, 'arbitrary').

    x_ref           : [B, D, t_tile] streamed block of the encoder output
    w1m/w1s         : [D, E] BN-folded emb Linear, split into mean / std halves
    b1              : [1, E] BN-folded bias
    wf, bf          : [E, C], [1, C] final Linear
    sum_sc/sumsq_sc : [B, D, 128] f32 lane-wide running first/second moments
    """
    t_idx = pl.program_id(0)

    @pl.when(t_idx == 0)
    def _init():
        sum_sc[...] = jnp.zeros_like(sum_sc)
        sumsq_sc[...] = jnp.zeros_like(sumsq_sc)

    def accumulate(valid_cols):
        # `valid_cols` is a static Python int.  Accumulate this tile's first
        # `valid_cols` time steps into the lane-wide partial sums.  Everything
        # is plain VPU work on [B, D, 128] chunks: no cross-lane reduction and
        # no tile-sized f32 temporaries in the hot path; the single 128->1
        # lane collapse happens once, in the finalize block.
        n_full = valid_cols // _LANE
        rem = valid_cols % _LANE
        s = sum_sc[...]
        q = sumsq_sc[...]
        for c in range(n_full):                          # static unroll
            xc = x_ref[:, :, c * _LANE:(c + 1) * _LANE].astype(jnp.float32)
            s = s + xc
            q = q + xc * xc
        if rem:
            # Straddling chunk of the (only possible) partial tile: lanes past
            # T hold unspecified VMEM contents, so select them to exactly 0.
            xc = x_ref[:, :, n_full * _LANE:(n_full + 1) * _LANE]
            xc = xc.astype(jnp.float32)
            lane = jax.lax.broadcasted_iota(jnp.int32, xc.shape, 2)
            xc = jnp.where(lane < rem, xc, 0.0)
            s = s + xc
            q = q + xc * xc
        sum_sc[...] = s
        sumsq_sc[...] = q

    last_valid = t_total - (n_t - 1) * t_tile            # static
    if last_valid == t_tile:
        accumulate(t_tile)                                # every tile is full
    else:
        if n_t > 1:
            @pl.when(t_idx < n_t - 1)
            def _full_tiles():
                accumulate(t_tile)

        @pl.when(t_idx == n_t - 1)
        def _partial_tile():
            accumulate(last_valid)

    @pl.when(t_idx == n_t - 1)
    def _finalize():
        t = jnp.float32(t_total)
        s_tot = jnp.sum(sum_sc[...], axis=-1)             # [B, D]
        q_tot = jnp.sum(sumsq_sc[...], axis=-1)            # [B, D]
        mean = s_tot / t
        # One-pass unbiased variance; clamp guards f32 cancellation.
        # NOTE: for extremely long T (tens of thousands of frames) Chan's
        # parallel-variance merge would retain more digits.
        var = (q_tot - t * mean * mean) / (t - 1.0)
        std = jnp.sqrt(jnp.maximum(var, 0.0))              # [B, D]

        # emb Linear with BatchNorm1d(eval, affine=False) pre-folded; the
        # mean/std weight halves replace the lane-axis concatenation by two
        # MXU dots.
        emb = (jnp.dot(mean, w1m_ref[...], preferred_element_type=jnp.float32)
               + jnp.dot(std, w1s_ref[...], preferred_element_type=jnp.float32)
               + b1_ref[...])
        emb_ref[...] = emb.astype(emb_ref.dtype)

        act = jnp.maximum(emb, 0.0)                         # ReLU
        out = jnp.dot(act, wf_ref[...],
                      preferred_element_type=jnp.float32) + bf_ref[...]
        out_ref[...] = out.astype(out_ref.dtype)


def _vmem_capacity_bytes():
    try:
        cap = getattr(pltpu.get_tpu_info(), "vmem_capacity_bytes", None)
        if cap:
            return int(cap)
    except Exception:
        pass
    return 64 << 20        # conservative default: assume v7x-sized VMEM


def _resident_spec(shape):
    """Constant (grid-invariant) block: fetched once, single-buffered."""
    index_map = lambda t: (0,) * len(shape)
    try:
        return pl.BlockSpec(shape, index_map, pipeline_mode=pl.Buffered(1))
    except Exception:      # older jax without pipeline_mode / pl.Buffered
        return pl.BlockSpec(shape, index_map)


def speaker_decoder_forward(x, w1, b1, rm, rv, wf, bf):
    """x: [B, D, T] (f32 or bf16); w1: [2D, E]; b1/rm/rv: [1, E];
    wf: [E, C]; bf: [1, C].  Returns (logits [B, C], emb [B, E]) in f32."""
    B, D, T = x.shape
    assert T >= 2, "unbiased std (ddof=1) requires T >= 2"
    E = w1.shape[1]
    C = wf.shape[1]

    # ---- fold BatchNorm1d(affine=False, eval) into the emb Linear and split
    #      the folded weight into its mean / std halves (no in-kernel concat).
    scale = jax.lax.rsqrt(rv.astype(jnp.float32) + BN_EPS)            # [1, E]
    w1f = w1.astype(jnp.float32) * scale                               # [2D, E]
    b1f = (b1.astype(jnp.float32) - rm.astype(jnp.float32)) * scale    # [1, E]
    w1m, w1s = w1f[:D], w1f[D:]                                        # [D, E]

    itemsize = jnp.dtype(x.dtype).itemsize
    d_sub = _round_up(D, 8)                 # sublane-padded channels in VMEM

    # ---- generation-aware VMEM budget ---------------------------------------
    vmem_cap = _vmem_capacity_bytes()
    if vmem_cap >= (100 << 20):             # v5e / v6e: 128 MiB physical VMEM
        x_budget, vmem_ceiling = 48 << 20, 96 << 20
    else:                                   # v7x: 64 MiB physical VMEM
        x_budget, vmem_ceiling = 16 << 20, 52 << 20

    # VMEM that is resident regardless of tile size: single-buffered weights,
    # outputs, the lane-wide f32 accumulators, their loop-carried partials and
    # one per-chunk f32 temporary (temporaries the old budget ignored).
    acc_bytes = 2 * 4 * B * d_sub * _LANE
    resident = (4 * (2 * D * E + E + E * C + C)      # w1m, w1s, b1, wf, bf
                + 2 * 4 * (B * E + B * C)            # out / emb blocks
                + acc_bytes                          # scratch accumulators
                + acc_bytes                          # loop-carried partials
                + 4 * B * d_sub * _LANE)             # per-chunk f32 temporary
    x_stream_budget = max(2 << 20, x_budget - resident)

    # ---- time tile: sized by bytes (double-buffered stream), multiple of 128,
    #      bounded unroll, never longer than the (rounded-up) sequence. --------
    bytes_per_col = B * d_sub * itemsize
    t_tile = (x_stream_budget // (2 * bytes_per_col)) // _LANE * _LANE
    t_tile = int(max(_LANE,
                     min(t_tile, _MAX_CHUNKS * _LANE, _round_up(T, _LANE))))
    n_t = int(pl.cdiv(T, t_tile))

    tile_bytes = B * d_sub * t_tile * itemsize
    vmem_limit = int(min(max(2 * tile_bytes + resident + (2 << 20), 24 << 20),
                         vmem_ceiling))

    kernel = functools.partial(speaker_decoder_kernel,
                               t_total=T, t_tile=t_tile, n_t=n_t)

    grid_spec = pltpu.PrefetchScalarGridSpec(
        num_scalar_prefetch=0,
        grid=(n_t,),
        in_specs=[
            pl.BlockSpec((B, D, t_tile), lambda t: (0, 0, t)),   # streamed x
            _resident_spec((D, E)),                              # w1 (mean half)
            _resident_spec((D, E)),                              # w1 (std half)
            _resident_spec((1, E)),                              # folded bias
            _resident_spec((E, C)),                              # final weight
            _resident_spec((1, C)),                              # final bias
        ],
        out_specs=(
            pl.BlockSpec((B, C), lambda t: (0, 0)),
            pl.BlockSpec((B, E), lambda t: (0, 0)),
        ),
        scratch_shapes=[
            pltpu.VMEM((B, D, _LANE), jnp.float32),   # running sum(x)
            pltpu.VMEM((B, D, _LANE), jnp.float32),   # running sum(x*x)
        ],
    )

    # NOTE: on v7x a leading 'parallel' grid axis could split the time
    # reduction across both TensorCores (per-core partial sums + a small
    # epilogue); not done here to keep the single-pass structure simple.
    return pl.pallas_call(
        kernel,
        out_shape=(jax.ShapeDtypeStruct((B, C), jnp.float32),
                   jax.ShapeDtypeStruct((B, E), jnp.float32)),
        grid_spec=grid_spec,
        compiler_params=pltpu.CompilerParams(
            dimension_semantics=("arbitrary",),       # time is a reduction
            vmem_limit_bytes=vmem_limit,
        ),
        cost_estimate=pl.CostEstimate(
            flops=int(3 * B * D * T + 4 * B * D * E + 2 * B * E * C),
            transcendentals=int(B * D),
            bytes_accessed=int(B * D * T * itemsize
                               + 4 * (w1f.size + wf.size + B * (C + E))),
        ),
    )(x, w1m, w1s, b1f, wf, bf)


def _xavier_uniform(key, fan_in, fan_out):
    limit = jnp.sqrt(6.0 / (fan_in + fan_out))
    return jax.random.uniform(key, (fan_in, fan_out), jnp.float32, -limit, limit)


def _reference(x, w1, b1, rm, rv, wf, bf):
    x = x.astype(jnp.float32)
    mean = jnp.mean(x, axis=-1)
    std = jnp.std(x, axis=-1, ddof=1)
    pooled = jnp.concatenate([mean, std], axis=-1)
    h = pooled @ w1 + b1
    emb = (h - rm) / jnp.sqrt(rv + BN_EPS)
    out = jnp.maximum(emb, 0.0) @ wf + bf
    return out, emb


if __name__ == "__main__":
    # Small shapes consistent with the module's forward.
    B, feat_in, E, C = 2, 4, 32, 8          # encoder [B, feat_in, T]; emb_sizes=[32]
    pooled_dim = 2 * feat_in                # xvector pooling doubles feat_in

    key = jax.random.PRNGKey(0)
    kx1, kx2, kx3, k1, k2, k3, k4 = jax.random.split(key, 7)

    # emb layer: Linear(pooled_dim -> E) (xavier_uniform, zero bias),
    # BatchNorm1d(E, affine=False) with non-trivial running stats.
    w1 = _xavier_uniform(k1, pooled_dim, E)
    b1 = jnp.zeros((1, E), jnp.float32)
    rm = 0.05 * jax.random.normal(k3, (1, E), jnp.float32)
    rv = 1.0 + 0.1 * jax.random.uniform(k4, (1, E), jnp.float32)

    # final Linear(E -> C) with bias (angular=False).
    wf = _xavier_uniform(k2, E, C)
    bf = jax.random.uniform(k2, (1, C), jnp.float32, -0.1, 0.1)

    def run_and_check(kx, T, atol, rtol):
        x = jax.random.normal(kx, (B, feat_in, T), jnp.float32)
        out, emb = speaker_decoder_forward(x, w1, b1, rm, rv, wf, bf)
        out, emb = jax.block_until_ready(out), jax.block_until_ready(emb)
        out_ref, emb_ref = _reference(x, w1, b1, rm, rv, wf, bf)
        assert out.shape == (B, C) and emb.shape == (B, E)
        assert jnp.allclose(out, out_ref, atol=atol, rtol=rtol), f"out mismatch T={T}"
        assert jnp.allclose(emb, emb_ref, atol=atol, rtol=rtol), f"emb mismatch T={T}"

    # test 1: tiny T (single masked chunk, single tile)
    run_and_check(kx1, 16, 1e-5, 1e-5)
    # test 2: moderate T (single tile, many full chunks + masked tail)
    run_and_check(kx2, 2600, 1e-3, 1e-3)
    # test 3: long T (multiple pipelined time tiles + masked partial last tile)
    run_and_check(kx3, 8300, 1e-3, 1e-3)

    print("KERNEL_OK")
</pallas_src>

<mosaic_0001>
module attributes {stable_mosaic.version = 11 : i64} {
  func.func @speaker_decoder_kernel(%arg0: i32, %arg1: memref<2x4x128xf32, #tpu.memory_space<vmem>>, %arg2: memref<4x32xf32, #tpu.memory_space<vmem>>, %arg3: memref<4x32xf32, #tpu.memory_space<vmem>>, %arg4: memref<1x32xf32, #tpu.memory_space<vmem>>, %arg5: memref<32x8xf32, #tpu.memory_space<vmem>>, %arg6: memref<1x8xf32, #tpu.memory_space<vmem>>, %arg7: memref<2x8xf32, #tpu.memory_space<vmem>>, %arg8: memref<2x32xf32, #tpu.memory_space<vmem>>, %arg9: memref<2x4x128xf32, #tpu.memory_space<vmem>>, %arg10: memref<2x4x128xf32, #tpu.memory_space<vmem>>) attributes {dimension_semantics = [#tpu.dimension_semantics<arbitrary>], iteration_bounds = array<i64: 1>, scalar_prefetch = 0 : i64, scratch_operands = 2 : i64, tpu.core_type = #tpu.core_type<tc>, window_params = [{transform_indices = @transform_0, window_bounds = array<i64: 2, 4, 128>}, {pipeline_mode = #tpu.pipeline_mode<synchronous>, transform_indices = @transform_1, window_bounds = array<i64: 4, 32>}, {pipeline_mode = #tpu.pipeline_mode<synchronous>, transform_indices = @transform_2, window_bounds = array<i64: 4, 32>}, {pipeline_mode = #tpu.pipeline_mode<synchronous>, transform_indices = @transform_3, window_bounds = array<i64: 1, 32>}, {pipeline_mode = #tpu.pipeline_mode<synchronous>, transform_indices = @transform_4, window_bounds = array<i64: 32, 8>}, {pipeline_mode = #tpu.pipeline_mode<synchronous>, transform_indices = @transform_5, window_bounds = array<i64: 1, 8>}, {pipeline_mode = #tpu.pipeline_mode<synchronous>, transform_indices = @transform_6, window_bounds = array<i64: 2, 8>}, {pipeline_mode = #tpu.pipeline_mode<synchronous>, transform_indices = @transform_7, window_bounds = array<i64: 2, 32>}]} {
    %c0_i32 = arith.constant 0 : i32
    %0 = arith.cmpi eq, %arg0, %c0_i32 : i32
    %1 = arith.extui %0 : i1 to i32
    %c0_i32_0 = arith.constant 0 : i32
    %2 = arith.cmpi ne, %1, %c0_i32_0 : i32
    scf.if %2 {
      %cst = arith.constant 0.000000e+00 : f32
      %9 = vector.broadcast %cst : f32 to vector<2x4x128xf32>
      %c0 = arith.constant 0 : index
      %c0_5 = arith.constant 0 : index
      %c0_6 = arith.constant 0 : index
      %10 = vector.load %arg9[%c0, %c0_5, %c0_6] : memref<2x4x128xf32, #tpu.memory_space<vmem>>, vector<2x4x128xf32>
      tpu.vector_store %arg9[%c0, %c0_5, %c0_6], %9 {strides = array<i32>} : memref<2x4x128xf32, #tpu.memory_space<vmem>>, vector<2x4x128xf32>,
      %cst_7 = arith.constant 0.000000e+00 : f32
      %11 = vector.broadcast %cst_7 : f32 to vector<2x4x128xf32>
      %c0_8 = arith.constant 0 : index
      %c0_9 = arith.constant 0 : index
      %c0_10 = arith.constant 0 : index
      %12 = vector.load %arg10[%c0_8, %c0_9, %c0_10] : memref<2x4x128xf32, #tpu.memory_space<vmem>>, vector<2x4x128xf32>
      tpu.vector_store %arg10[%c0_8, %c0_9, %c0_10], %11 {strides = array<i32>} : memref<2x4x128xf32, #tpu.memory_space<vmem>>, vector<2x4x128xf32>,
    } else {
    }
    %c0_i32_1 = arith.constant 0 : i32
    %3 = arith.cmpi eq, %arg0, %c0_i32_1 : i32
    %4 = arith.extui %3 : i1 to i32
    %c0_i32_2 = arith.constant 0 : i32
    %5 = arith.cmpi ne, %4, %c0_i32_2 : i32
    scf.if %5 {
      %c0 = arith.constant 0 : index
      %c0_5 = arith.constant 0 : index
      %c0_6 = arith.constant 0 : index
      %9 = vector.load %arg9[%c0, %c0_5, %c0_6] : memref<2x4x128xf32, #tpu.memory_space<vmem>>, vector<2x4x128xf32>
      %c0_7 = arith.constant 0 : index
      %c0_8 = arith.constant 0 : index
      %c0_9 = arith.constant 0 : index
      %10 = vector.load %arg10[%c0_7, %c0_8, %c0_9] : memref<2x4x128xf32, #tpu.memory_space<vmem>>, vector<2x4x128xf32>
      %c0_10 = arith.constant 0 : index
      %c0_11 = arith.constant 0 : index
      %c0_12 = arith.constant 0 : index
      %11 = vector.load %arg1[%c0_10, %c0_11, %c0_12] : memref<2x4x128xf32, #tpu.memory_space<vmem>>, vector<2x4x128xf32>
      %12 = tpu.iota {dimensions = array<i32: 2>} : vector<2x4x128xi32>
      %c16_i32 = arith.constant 16 : i32
      %13 = vector.broadcast %c16_i32 : i32 to vector<2x4x128xi32>
      %14 = arith.cmpi slt, %12, %13 : vector<2x4x128xi32>
      %cst = arith.constant 0.000000e+00 : f32
      %15 = vector.broadcast %cst : f32 to vector<2x4x128xf32>
      %16 = arith.select %14, %11, %15 : vector<2x4x128xi1>, vector<2x4x128xf32>
      %17 = arith.addf %9, %16 : vector<2x4x128xf32>
      %18 = arith.mulf %16, %16 : vector<2x4x128xf32>
      %19 = arith.addf %10, %18 : vector<2x4x128xf32>
      %c0_13 = arith.constant 0 : index
      %c0_14 = arith.constant 0 : index
      %c0_15 = arith.constant 0 : index
      %20 = vector.load %arg9[%c0_13, %c0_14, %c0_15] : memref<2x4x128xf32, #tpu.memory_space<vmem>>, vector<2x4x128xf32>
      tpu.vector_store %arg9[%c0_13, %c0_14, %c0_15], %17 {strides = array<i32>} : memref<2x4x128xf32, #tpu.memory_space<vmem>>, vector<2x4x128xf32>,
      %c0_16 = arith.constant 0 : index
      %c0_17 = arith.constant 0 : index
      %c0_18 = arith.constant 0 : index
      %21 = vector.load %arg10[%c0_16, %c0_17, %c0_18] : memref<2x4x128xf32, #tpu.memory_space<vmem>>, vector<2x4x128xf32>
      tpu.vector_store %arg10[%c0_16, %c0_17, %c0_18], %19 {strides = array<i32>} : memref<2x4x128xf32, #tpu.memory_space<vmem>>, vector<2x4x128xf32>,
    } else {
    }
    %c0_i32_3 = arith.constant 0 : i32
    %6 = arith.cmpi eq, %arg0, %c0_i32_3 : i32
    %7 = arith.extui %6 : i1 to i32
    %c0_i32_4 = arith.constant 0 : i32
    %8 = arith.cmpi ne, %7, %c0_i32_4 : i32
    scf.if %8 {
      %c0 = arith.constant 0 : index
      %c0_5 = arith.constant 0 : index
      %c0_6 = arith.constant 0 : index
      %9 = vector.load %arg9[%c0, %c0_5, %c0_6] : memref<2x4x128xf32, #tpu.memory_space<vmem>>, vector<2x4x128xf32>
      %cst = arith.constant dense<0.000000e+00> : vector<2x4xf32>
      %10 = vector.multi_reduction <add>, %9, %cst [2] : vector<2x4x128xf32> to vector<2x4xf32>
      %c0_7 = arith.constant 0 : index
      %c0_8 = arith.constant 0 : index
      %c0_9 = arith.constant 0 : index
      %11 = vector.load %arg10[%c0_7, %c0_8, %c0_9] : memref<2x4x128xf32, #tpu.memory_space<vmem>>, vector<2x4x128xf32>
      %cst_10 = arith.constant dense<0.000000e+00> : vector<2x4xf32>
      %12 = vector.multi_reduction <add>, %11, %cst_10 [2] : vector<2x4x128xf32> to vector<2x4xf32>
      %cst_11 = arith.constant 1.600000e+01 : f32
      %13 = vector.broadcast %cst_11 : f32 to vector<2x4xf32>
      %14 = arith.divf %10, %13 : vector<2x4xf32>
      %cst_12 = arith.constant 1.600000e+01 : f32
      %15 = vector.broadcast %cst_12 : f32 to vector<2x4xf32>
      %16 = arith.mulf %15, %14 : vector<2x4xf32>
      %17 = arith.mulf %16, %14 : vector<2x4xf32>
      %18 = arith.subf %12, %17 : vector<2x4xf32>
      %cst_13 = arith.constant 1.600000e+01 : f32
      %cst_14 = arith.constant 1.000000e+00 : f32
      %19 = arith.subf %cst_13, %cst_14 : f32
      %20 = vector.broadcast %19 : f32 to vector<2x4xf32>
      %21 = arith.divf %18, %20 : vector<2x4xf32>
      %cst_15 = arith.constant 0.000000e+00 : f32
      %22 = vector.broadcast %cst_15 : f32 to vector<2x4xf32>
      %23 = arith.maximumf %21, %22 : vector<2x4xf32>
      %24 = math.sqrt %23 : vector<2x4xf32>
      %c0_16 = arith.constant 0 : index
      %c0_17 = arith.constant 0 : index
      %25 = vector.load %arg2[%c0_16, %c0_17] : memref<4x32xf32, #tpu.memory_space<vmem>>, vector<4x32xf32>
      %cst_18 = arith.constant dense<0.000000e+00> : vector<2x32xf32>
      %26 = tpu.matmul %14, %25, %cst_18 {dimension_numbers = #tpu.dot_dimension_numbers<[1], [0], [0], [1], [0, 0, 1, 1], [], []>} : vector<2x4xf32>, vector<4x32xf32>, vector<2x32xf32> -> vector<2x32xf32>
      %c0_19 = arith.constant 0 : index
      %c0_20 = arith.constant 0 : index
      %27 = vector.load %arg3[%c0_19, %c0_20] : memref<4x32xf32, #tpu.memory_space<vmem>>, vector<4x32xf32>
      %cst_21 = arith.constant dense<0.000000e+00> : vector<2x32xf32>
      %28 = tpu.matmul %24, %27, %cst_21 {dimension_numbers = #tpu.dot_dimension_numbers<[1], [0], [0], [1], [0, 0, 1, 1], [], []>} : vector<2x4xf32>, vector<4x32xf32>, vector<2x32xf32> -> vector<2x32xf32>
      %29 = arith.addf %26, %28 : vector<2x32xf32>
      %c0_22 = arith.constant 0 : index
      %c0_23 = arith.constant 0 : index
      %30 = vector.load %arg4[%c0_22, %c0_23] : memref<1x32xf32, #tpu.memory_space<vmem>>, vector<1x32xf32>
      %31 = vector.broadcast %30 : vector<1x32xf32> to vector<2x32xf32>
      %32 = arith.addf %29, %31 : vector<2x32xf32>
      %c0_24 = arith.constant 0 : index
      %c0_25 = arith.constant 0 : index
      %33 = vector.load %arg8[%c0_24, %c0_25] : memref<2x32xf32, #tpu.memory_space<vmem>>, vector<2x32xf32>
      tpu.vector_store %arg8[%c0_24, %c0_25], %32 {strides = array<i32>} : memref<2x32xf32, #tpu.memory_space<vmem>>, vector<2x32xf32>,
      %cst_26 = arith.constant 0.000000e+00 : f32
      %34 = vector.broadcast %cst_26 : f32 to vector<2x32xf32>
      %35 = arith.maximumf %32, %34 : vector<2x32xf32>
      %c0_27 = arith.constant 0 : index
      %c0_28 = arith.constant 0 : index
      %36 = vector.load %arg5[%c0_27, %c0_28] : memref<32x8xf32, #tpu.memory_space<vmem>>, vector<32x8xf32>
      %cst_29 = arith.constant dense<0.000000e+00> : vector<2x8xf32>
      %37 = tpu.matmul %35, %36, %cst_29 {dimension_numbers = #tpu.dot_dimension_numbers<[1], [0], [0], [1], [0, 0, 1, 1], [], []>} : vector<2x32xf32>, vector<32x8xf32>, vector<2x8xf32> -> vector<2x8xf32>
      %c0_30 = arith.constant 0 : index
      %c0_31 = arith.constant 0 : index
      %38 = vector.load %arg6[%c0_30, %c0_31] : memref<1x8xf32, #tpu.memory_space<vmem>>, vector<1x8xf32>
      %39 = vector.broadcast %38 : vector<1x8xf32> to vector<2x8xf32>
      %40 = arith.addf %37, %39 : vector<2x8xf32>
      %c0_32 = arith.constant 0 : index
      %c0_33 = arith.constant 0 : index
      %41 = vector.load %arg7[%c0_32, %c0_33] : memref<2x8xf32, #tpu.memory_space<vmem>>, vector<2x8xf32>
      tpu.vector_store %arg7[%c0_32, %c0_33], %40 {strides = array<i32>} : memref<2x8xf32, #tpu.memory_space<vmem>>, vector<2x8xf32>,
    } else {
    }
    return
  }
  func.func @transform_0(%arg0: i32) -> (i32, i32, i32) {
    %c0_i32 = arith.constant 0 : i32
    %c0_i32_0 = arith.constant 0 : i32
    %c0_i32_1 = arith.constant 0 : i32
    return %c0_i32, %c0_i32_0, %arg0 : i32, i32, i32
  }
  func.func @transform_1(%arg0: i32) -> (i32, i32) {
    %c0_i32 = arith.constant 0 : i32
    %c0_i32_0 = arith.constant 0 : i32
    %c0_i32_1 = arith.constant 0 : i32
    return %c0_i32, %c0_i32_0 : i32, i32
  }
  func.func @transform_2(%arg0: i32) -> (i32, i32) {
    %c0_i32 = arith.constant 0 : i32
    %c0_i32_0 = arith.constant 0 : i32
    %c0_i32_1 = arith.constant 0 : i32
    return %c0_i32, %c0_i32_0 : i32, i32
  }
  func.func @transform_3(%arg0: i32) -> (i32, i32) {
    %c0_i32 = arith.constant 0 : i32
    %c0_i32_0 = arith.constant 0 : i32
    %c0_i32_1 = arith.constant 0 : i32
    return %c0_i32, %c0_i32_0 : i32, i32
  }
  func.func @transform_4(%arg0: i32) -> (i32, i32) {
    %c0_i32 = arith.constant 0 : i32
    %c0_i32_0 = arith.constant 0 : i32
    %c0_i32_1 = arith.constant 0 : i32
    return %c0_i32, %c0_i32_0 : i32, i32
  }
  func.func @transform_5(%arg0: i32) -> (i32, i32) {
    %c0_i32 = arith.constant 0 : i32
    %c0_i32_0 = arith.constant 0 : i32
    %c0_i32_1 = arith.constant 0 : i32
    return %c0_i32, %c0_i32_0 : i32, i32
  }
  func.func @transform_6(%arg0: i32) -> (i32, i32) {
    %c0_i32 = arith.constant 0 : i32
    %c0_i32_0 = arith.constant 0 : i32
    %c0_i32_1 = arith.constant 0 : i32
    return %c0_i32, %c0_i32_0 : i32, i32
  }
  func.func @transform_7(%arg0: i32) -> (i32, i32) {
    %c0_i32 = arith.constant 0 : i32
    %c0_i32_0 = arith.constant 0 : i32
    %c0_i32_1 = arith.constant 0 : i32
    return %c0_i32, %c0_i32_0 : i32, i32
  }
}

</mosaic_0001>

<llo_original>
// kernel: tpu_custom_call.1
$region0: #{tpu_custom_call.1}
  #allocation0 [shape = 'u32[]', space=smem, size = 0x4, offset = 0x4, fixed_abs, tag = 'smem constant byte address 0x4 - core index']
  #allocation1 [shape = 'u32[72,128]{1,0:T(1,128)}', space=vmem, size = 0x9000, scoped, tag = 'internal scratch']
  #allocation2 [shape = 'f32[2,4,128]{2,1,0:T(4,128)}', space=vmem, size = 0x1000, scoped, tag = 'scratch operand']
  #allocation3 [shape = 'f32[2,4,128]{2,1,0:T(4,128)}', space=vmem, size = 0x1000, scoped, tag = 'scratch operand']
  %s0 = inlined_call_operand.vmem [shape: f32[2,4,16], index: 0, kind: input, shape index: {}]
  %s1 = inlined_call_operand.vmem [shape: f32[4,32], index: 1, kind: input, shape index: {}]
  %s2 = inlined_call_operand.vmem [shape: f32[4,32], index: 2, kind: input, shape index: {}]
  %s3 = inlined_call_operand.vmem [shape: f32[1,32], index: 3, kind: input, shape index: {}]
  %s4 = inlined_call_operand.vmem [shape: f32[32,8], index: 4, kind: input, shape index: {}]
  %s5 = inlined_call_operand.vmem [shape: f32[1,8], index: 5, kind: input, shape index: {}]
  %s6 = inlined_call_operand.hbm [shape: f32[2,8], index: 6, kind: output, shape index: {0}]
  %s7 = inlined_call_operand.hbm [shape: f32[2,32], index: 7, kind: output, shape index: {1}]
  %8 = xla_tuple %s6, %s7
  %s9 = sld [smem:[#allocation0]]
  $region46: #{tpu_custom_call.1} parent=0
    _
  %s11 = ssub.s32 1, %s9
  %s12 = scalar_select 0, %s11, %s9
  $region1: #{tpu_custom_call.1} parent=0
    #allocation4 [shape = 'u8[1024]{0}', space=vmem, size = 0x400, scoped, tag = 'output window, operand 0, single buffered']
    #allocation5 [shape = 's32[1]{0}', space=sflag, size = 0x4, scoped, tag = 'scoped memory for tpu_custom_call.1']
    #allocation6 [shape = 'u8[1024]{0}', space=vmem, size = 0x400, scoped, tag = 'output window, operand 1, single buffered']
    #allocation7 [shape = 's32[1]{0}', space=sflag, size = 0x4, scoped, tag = 'scoped memory for tpu_custom_call.1']
    %13 = vsyncpa [#allocation5], 0
    %14 = vsyncpa [#allocation7], 0
    // Predicated region
    $region2: #{tpu_custom_call.1} parent=1 // pred_check
      _
    $region3: #{tpu_custom_call.1} parent=1 // pred_check_branch
      %16 = sbr.rel (0) target = $region5
    $region4: #{tpu_custom_call.1} parent=1 // pred_region
      _
    $region5: #{tpu_custom_call.1} parent=1 // pred_fallthru
      _
    // Predicated region
    $region6: #{tpu_custom_call.1} parent=1 // pred_check
      _
    $region7: #{tpu_custom_call.1} parent=1 // pred_check_branch
      %18 = sbr.rel (0) target = $region9
    $region8: #{tpu_custom_call.1} parent=1 // pred_region
      _
    $region9: #{tpu_custom_call.1} parent=1 // pred_fallthru
      _
    // Predicated region
    $region10: #{tpu_custom_call.1} parent=1 // pred_check
      _
    $region11: #{tpu_custom_call.1} parent=1 // pred_check_branch
      %20 = sbr.rel (0) target = $region13
    $region12: #{tpu_custom_call.1} parent=1 // pred_region
      _
    $region13: #{tpu_custom_call.1} parent=1 // pred_fallthru
      _
    // Predicated region
    $region14: #{tpu_custom_call.1} parent=1 // pred_check
      _
    $region15: #{tpu_custom_call.1} parent=1 // pred_check_branch
      %22 = sbr.rel (0) target = $region17
    $region16: #{tpu_custom_call.1} parent=1 // pred_region
      _
    $region17: #{tpu_custom_call.1} parent=1 // pred_fallthru
      _
    // Predicated region
    $region18: #{tpu_custom_call.1} parent=1 // pred_check
      _
    $region19: #{tpu_custom_call.1} parent=1 // pred_check_branch
      %24 = sbr.rel (0) target = $region21
    $region20: #{tpu_custom_call.1} parent=1 // pred_region
      _
    $region21: #{tpu_custom_call.1} parent=1 // pred_fallthru
      _
    // Predicated region
    $region22: #{tpu_custom_call.1} parent=1 // pred_check
      _
    $region23: #{tpu_custom_call.1} parent=1 // pred_check_branch
      %26 = sbr.rel (0) target = $region25
    $region24: #{tpu_custom_call.1} parent=1 // pred_region
      _
    $region25: #{tpu_custom_call.1} parent=1 // pred_fallthru
      _
    %p27 = scmp.eq.s32.totalorder 0, 0
    // Predicated region
    $region26: #{tpu_custom_call.1} parent=1 // pred_check
      %p28 = pneg %p27
    $region27: #{tpu_custom_call.1} parent=1 // pred_check_branch
      %30 = sbr.rel (%p28) target = $region29
    $region28: #{tpu_custom_call.1} parent=1 // pred_region
      %31 = vst [vmem:[#allocation2] sm:$0xf] 0.0
      %32 = vst [vmem:[#allocation2 + $0x4] sm:$0xf] 0.0
      %33 = vst [vmem:[#allocation3] sm:$0xf] 0.0
      %34 = vst [vmem:[#allocation3 + $0x4] sm:$0xf] 0.0
      %v35 = vld [vmem:[#allocation2] sm:$0xf]
      %v36 = vld [vmem:[#allocation2 + $0x4] sm:$0xf]
      %v37 = vld [vmem:[#allocation3] sm:$0xf]
      %v38 = vld [vmem:[#allocation3 + $0x4] sm:$0xf]
      %v39 = vld [vmem:[%s0] sm:$0xf]
      %v40 = vld [vmem:[%s0 + $0x4] sm:$0xf]
      %v41 = vlaneseq
      %v42 = vand.u32 %v41, 127
      %vm43 = vcmp.lt.s32.totalorder %v42, 16
      %v44 = vsel %vm43, %v39, 0.0
      %v45 = vsel %vm43, %v40, 0.0
      %v46 = vadd.f32 %v35, %v44
      %v47 = vadd.f32 %v36, %v45
      %v48 = vmul.f32 %v44, %v44
      %v49 = vmul.f32 %v45, %v45
      %v50 = vadd.f32 %v37, %v48
      %v51 = vadd.f32 %v38, %v49
      %52 = vst [vmem:[#allocation2] sm:$0xf] %v46
      %53 = vst [vmem:[#allocation2 + $0x4] sm:$0xf] %v47
      %54 = vst [vmem:[#allocation3] sm:$0xf] %v50
      %55 = vst [vmem:[#allocation3 + $0x4] sm:$0xf] %v51
      %v56 = vld [vmem:[#allocation2] sm:$0xf]
      %v57 = vld [vmem:[#allocation2 + $0x4] sm:$0xf]
      %vm58 = vcmask 1043456
      %v59 = vsel %vm58, %v56, 0.0
      %60 = vadd.xlane.f32.xlu0 %v59
      %v61 = vpop.xlane.xlu0 %60
      %v62 = vsel %vm58, %v57, 0.0
      %63 = vadd.xlane.f32.xlu0 %v62
      %v64 = vpop.xlane.xlu0 %63
      %v65 = vld [vmem:[#allocation3] sm:$0xf]
      %v66 = vld [vmem:[#allocation3 + $0x4] sm:$0xf]
      %v67 = vsel %vm58, %v65, 0.0
      %68 = vadd.xlane.f32.xlu0 %v67
      %v69 = vpop.xlane.xlu0 %68
      %v70 = vsel %vm58, %v66, 0.0
      %71 = vadd.xlane.f32.xlu0 %v70
      %v72 = vpop.xlane.xlu0 %71
      %v73 = vrcp.pop 16.0
      %v74 = vmul.f32 16.0, %v73
      %v75 = vsub.f32 1.0, %v74
      %v76 = vmul.f32 %v73, %v75
      %v77 = vadd.f32 %v73, %v76
      %vm78 = vweird.f32 %v73
      %v79 = vsel %vm78, %v73, %v77
      %v80 = vmul.f32 %v61, %v79
      %v81 = vmul.f32 %v64, %v79
      %v82 = vmul.f32 %v80, 16.0
      %v83 = vmul.f32 %v81, 16.0
      %v84 = vmul.f32 %v82, %v80
      %v85 = vmul.f32 %v83, %v81
      %v86 = vsub.f32 %v69, %v84
      %v87 = vsub.f32 %v72, %v85
      %v88 = vrcp.pop 15.0
      %v89 = vmul.f32 15.0, %v88
      %v90 = vsub.f32 1.0, %v89
      %v91 = vmul.f32 %v88, %v90
      %v92 = vadd.f32 %v88, %v91
      %vm93 = vweird.f32 %v88
      %v94 = vsel %vm93, %v88, %v92
      %v95 = vmul.f32 %v86, %v94
      %v96 = vmul.f32 %v87, %v94
      %v97 = vmax.f32 %v95, 0.0
      %v98 = vmax.f32 %v96, 0.0
      %v99 = vrsqrt.pop %v97
      %v100 = vmul.f32 %v99, %v97
      %v101 = vmul.f32 %v100, %v99
      %v102 = vmul.f32 0.5, %v101
      %v103 = vsub.f32 1.5, %v102
      %v104 = vmul.f32 %v99, %v103
      %v105 = vmul.f32 %v97, %v104
      %vm106 = vcmp.eq.f32.partialorder %v97, inf
      %v107 = vsel %vm106, %v97, %v105
      %vm108 = vcmp.eq.f32.partialorder %v97, 0.0
      %v109 = vand.u32 %v97, 2147483648
      %v110 = vsel %vm108, %v109, %v107
      %v111 = vrsqrt.pop %v98
      %v112 = vmul.f32 %v111, %v98
      %v113 = vmul.f32 %v112, %v111
      %v114 = vmul.f32 0.5, %v113
      %v115 = vsub.f32 1.5, %v114
      %v116 = vmul.f32 %v111, %v115
      %v117 = vmul.f32 %v98, %v116
      %vm118 = vcmp.eq.f32.partialorder %v98, inf
      %v119 = vsel %vm118, %v98, %v117
      %vm120 = vcmp.eq.f32.partialorder %v98, 0.0
      %v121 = vand.u32 %v98, 2147483648
      %v122 = vsel %vm120, %v121, %v119
      %v123 = vld [vmem:[%s1] sm:$0xf]
      %v124 = vld [vmem:[%s2] sm:$0xf]
      %v127 = vperm.slane %v110, %v42
      %v128 = vperm.slane %v122, %v42
      %vm129 = vcmask 1041409
      %v130 = vsel %vm129, %v128, %v127
      %vm131 = vcmask 31744
      %v132 = vsel %vm131, %v130, 0
      %v135 = vsel %vm58, %v124, 0
      %137 = vmatpush.msra.mxu0 0.0
      %138 = vmatpush.msra.mxu0 0.0
      %139 = vmatpush.msra.mxu0 0.0
      %140 = vmatpush.msra.mxu0 0.0
      %141 = vmatpush.msra.mxu0 0.0
      %142 = vmatpush.msra.mxu0 0.0
      %143 = vmatpush.msra.mxu0 0.0
      %144 = vmatpush.msra.mxu0 0.0
      %145 = vmatpush.msra.mxu0 0.0
      %146 = vmatpush.msra.mxu0 0.0
      %147 = vmatpush.msra.mxu0 0.0
      %148 = vmatpush.msra.mxu0 0.0
      %149 = vmatpush.msra.mxu0 0.0
      %150 = vmatpush.msra.mxu0 0.0
      %151 = vmatpush.msra.mxu0 0.0
      %152 = vmatpush.msra.mxu0 %v135
      %153 = vmatmul.f32.gmra.mxu0 %v132
      %v154 = vpop.f32.mrf.mxu0
      %v155 = vadd.f32 0.0, %v154
      %156 = vdwg.mxu0
      %v159 = vperm.slane %v80, %v42
      %v160 = vperm.slane %v81, %v42
      %v161 = vsel %vm129, %v160, %v159
      %v162 = vsel %vm131, %v161, 0
      %v165 = vsel %vm58, %v123, 0
      %167 = vmatpush.msra.mxu0 0.0
      %168 = vmatpush.msra.mxu0 0.0
      %169 = vmatpush.msra.mxu0 0.0
      %170 = vmatpush.msra.mxu0 0.0
      %171 = vmatpush.msra.mxu0 0.0
      %172 = vmatpush.msra.mxu0 0.0
      %173 = vmatpush.msra.mxu0 0.0
      %174 = vmatpush.msra.mxu0 0.0
      %175 = vmatpush.msra.mxu0 0.0
      %176 = vmatpush.msra.mxu0 0.0
      %177 = vmatpush.msra.mxu0 0.0
      %178 = vmatpush.msra.mxu0 0.0
      %179 = vmatpush.msra.mxu0 0.0
      %180 = vmatpush.msra.mxu0 0.0
      %181 = vmatpush.msra.mxu0 0.0
      %182 = vmatpush.msra.mxu0 %v165
      %183 = vmatmul.f32.gmra.mxu0 %v162
      %v184 = vpop.f32.mrf.mxu0
      %v185 = vadd.f32 %v155, %v184
      %186 = vdwg.mxu0
      %v187 = vld [vmem:[%s3] sm:$0x1]
      %v189 = vperm.slane %v187, 0
      %v191 = vadd.f32 %v185, %v189
      %vm192 = vcmask 254976
      %193 = vst.msk [vmem:[#allocation6] sm:$0x3] %vm192, %v191
      %v194 = vmax.f32 %v191, 0.0
      %v195 = vld [vmem:[%s4] sm:$0xff]
      %v196 = vld [vmem:[%s4 + $0x8] sm:$0xff]
      %v197 = vld [vmem:[%s4 + $0x10] sm:$0xff]
      %v198 = vld [vmem:[%s4 + $0x18] sm:$0xff]
      %v199 = vld [vmem:[%s5] sm:$0x1]
      %v201 = vperm.slane %v199, 0
      %vm203 = vcmask 261120
      %v205 = vsel %vm203, %v194, 0
      %207 = vmatpush.msra.mxu0 0.0
      %208 = vmatpush.msra.mxu0 0.0
      %209 = vmatpush.msra.mxu0 0.0
      %210 = vmatpush.msra.mxu0 0.0
      %211 = vmatpush.msra.mxu0 0.0
      %212 = vmatpush.msra.mxu0 0.0
      %213 = vmatpush.msra.mxu0 0.0
      %214 = vmatpush.msra.mxu0 0.0
      %215 = vmatpush.msra.mxu0 0.0
      %216 = vmatpush.msra.mxu0 0.0
      %217 = vmatpush.msra.mxu0 0.0
      %218 = vmatpush.msra.mxu0 0.0
      %219 = vmatpush.msra.mxu0 %v198
      %220 = vmatpush.msra.mxu0 %v197
      %221 = vmatpush.msra.mxu0 %v196
      %222 = vmatpush.msra.mxu0 %v195
      %223 = vmatmul.f32.gmra.mxu0 %v205
      %v224 = vpop.f32.mrf.mxu0
      %v225 = vadd.f32 %v201, %v224
      %226 = vdwg.mxu0
      %vm227 = vcmask 58368
      %228 = vst.msk [vmem:[#allocation4] sm:$0x3] %vm227, %v225
    $region29: #{tpu_custom_call.1} parent=1 // pred_fallthru
      _
    // Predicated region
    $region30: #{tpu_custom_call.1} parent=1 // pred_check
      _
    $region31: #{tpu_custom_call.1} parent=1 // pred_check_branch
      %230 = sbr.rel (0) target = $region33
    $region32: #{tpu_custom_call.1} parent=1 // pred_region
      %232 = vsyncadd [#allocation5], 0
      %s234 = sshll.u32 [#allocation4], 4
      %s235 = int_to_ptr.vmem [resolvable:$true] %s234
      %s236 = sshll.u32 %s6, 4
      %s237 = int_to_ptr.hbm [resolvable:$true] %s236
      %239 = dma.vmem_to_hbm [thread:$0]  %s235, 32, %s237, [#allocation5]
    $region33: #{tpu_custom_call.1} parent=1 // pred_fallthru
      _
    // Predicated region
    $region34: #{tpu_custom_call.1} parent=1 // pred_check
      _
    $region35: #{tpu_custom_call.1} parent=1 // pred_check_branch
      %241 = sbr.rel (0) target = $region37
    $region36: #{tpu_custom_call.1} parent=1 // pred_region
      %243 = vsyncadd [#allocation7], 0
      %s245 = sshll.u32 [#allocation6], 4
      %s246 = int_to_ptr.vmem [resolvable:$true] %s245
      %s247 = sshll.u32 %s7, 4
      %s248 = int_to_ptr.hbm [resolvable:$true] %s247
      %250 = dma.vmem_to_hbm [thread:$0]  %s246, 32, %s248, [#allocation7]
    $region37: #{tpu_custom_call.1} parent=1 // pred_fallthru
      _
    // Predicated region
    $region38: #{tpu_custom_call.1} parent=1 // pred_check
      _
    $region39: #{tpu_custom_call.1} parent=1 // pred_check_branch
      %252 = sbr.rel (0) target = $region41
    $region40: #{tpu_custom_call.1} parent=1 // pred_region
      %254 = dma.done [#allocation5], 32
    $region41: #{tpu_custom_call.1} parent=1 // pred_fallthru
      _
    // Predicated region
    $region42: #{tpu_custom_call.1} parent=1 // pred_check
      _
    $region43: #{tpu_custom_call.1} parent=1 // pred_check_branch
      %256 = sbr.rel (0) target = $region45
    $region44: #{tpu_custom_call.1} parent=1 // pred_region
      %258 = dma.done [#allocation7], 32
    $region45: #{tpu_custom_call.1} parent=1 // pred_fallthru
      _
    %259 = vsyncpa [#allocation5], 1
    %260 = vsyncpa [#allocation7], 1

</llo_original>
